<compile_context>
chip_gen: v7x
topology: tpu7x:2x2x1
jax: 0.10.0
libtpu: 0.0.40
codegen_flags: <defaults>
</compile_context>

<pallas_src>
import functools

import jax
import jax.numpy as jnp
from jax.experimental import pallas as pl
from jax.experimental.pallas import tpu as pltpu


def matchshifted_kernel(left_ref, right_ref, out_ref, *, shift, width):
    # Block shapes: left/right (1, Ft, H*W), out (1, 2, Ft, H*W).
    l = left_ref[0]                     # (Ft, H*W)
    r = right_ref[0]                    # (Ft, H*W)
    hw = l.shape[-1]

    # Per-lane validity mask, built once at (1, HW); broadcasts along the
    # sublane (Ft) axis inside jnp.where.  Columns [0, shift) of every
    # (H-)row are zero-padded.
    lane = jax.lax.broadcasted_iota(jnp.int32, (1, hw), 1)
    if width & (width - 1) == 0:        # power-of-two W: cheap AND
        col = lane & (width - 1)
    else:
        col = lane % width
    valid = col >= shift
    zero = jnp.zeros((), l.dtype)

    # Channel group 0: left with the first `shift` columns of each row zeroed.
    out_ref[0, 0] = jnp.where(valid, l, zero)

    # Channel group 1: right shifted right by `shift` along W, zero-filled.
    # Rolling the flattened (H*W) axis moves r[i - shift] into position i;
    # elements that wrapped across row boundaries land in the masked region.
    r_rolled = pltpu.roll(r, shift=shift, axis=1) if shift else r
    out_ref[0, 1] = jnp.where(valid, r_rolled, zero)


def _pick_block_filters(B, F, HW, itemsize, budget_bytes=2 << 20):
    """Filter-block size: sublane-aligned, <= budget, >= 2 grid steps if possible."""
    # Sublane packing: 8 rows for 4B dtypes, 16 for 2B, 32 for 1B.
    sublane = max(8, 32 // max(itemsize, 1))
    row_bytes = HW * itemsize

    if F <= sublane:
        return F                        # full-extent block is the only legal choice

    # Largest sublane multiple whose input block fits the budget.
    max_ft = max(sublane, (budget_bytes // (row_bytes * sublane)) * sublane)

    if F <= max_ft:
        # Whole filter dim fits one block; keep it sublane-legal.
        ft = F if F % sublane == 0 else (F // sublane) * sublane
    else:
        ft = max_ft

    # v7x has 2 TensorCores: make sure the parallel grid has >= 2 steps.
    if B * pl.cdiv(F, ft) < 2 and ft >= 2 * sublane:
        ft = pl.cdiv(pl.cdiv(ft, 2), sublane) * sublane

    return ft


def matchshifted(left, right, shift):
    """left, right: (B, F, H, W).  Returns (B, 2F, 1, H, W)."""
    B, F, H, W = left.shape
    shift = int(shift)
    if not (0 <= shift < W):
        raise ValueError(f"shift must satisfy 0 <= shift < W, got {shift} (W={W})")

    HW = H * W
    itemsize = jnp.dtype(left.dtype).itemsize
    Ft = _pick_block_filters(B, F, HW, itemsize)
    n_fblocks = pl.cdiv(F, Ft)

    # Scoped VMEM: 2 inputs x 2 bufs x block + 1 output x 2 bufs x 2*block
    # = 8 * block; add 1.5x headroom, clamp into [16 MiB, 48 MiB] so we stay
    # legal on v5e's default and under v7x's 64 MiB physical VMEM.
    block_bytes = Ft * HW * itemsize
    vmem_limit = int(min(48 << 20, max(16 << 20, int(1.5 * 8 * block_bytes))))

    # Free (contiguous) collapse of the spatial dims onto the lane axis.
    left2 = left.reshape(B, F, HW)
    right2 = right.reshape(B, F, HW)

    kern = functools.partial(matchshifted_kernel, shift=shift, width=W)

    out = pl.pallas_call(
        kern,
        out_shape=jax.ShapeDtypeStruct((B, 2, F, HW), left.dtype),
        grid_spec=pltpu.PrefetchScalarGridSpec(
            num_scalar_prefetch=0,
            grid=(B, n_fblocks),
            in_specs=[pl.BlockSpec((1, Ft, HW), lambda b, fb: (b, fb, 0)),
                      pl.BlockSpec((1, Ft, HW), lambda b, fb: (b, fb, 0))],
            out_specs=pl.BlockSpec((1, 2, Ft, HW),
                                   lambda b, fb: (b, 0, fb, 0))),
        compiler_params=pltpu.CompilerParams(
            dimension_semantics=("parallel", "parallel"),
            vmem_limit_bytes=vmem_limit),
        cost_estimate=pl.CostEstimate(
            flops=0, transcendentals=0,
            bytes_accessed=4 * B * F * HW * itemsize),
    )(left2, right2)

    # (B, 2, F, H*W) -> (B, 2F, 1, H, W): contiguous view, matches torch.cat
    # channel order (first F channels = left, next F = right).
    return out.reshape(B, 2 * F, 1, H, W)


def matchshifted_ref(left, right, shift):
    """Pure-JAX reference mirroring the PyTorch forward."""
    B, F, H, W = left.shape
    sl = jnp.pad(left[..., shift:], ((0, 0), (0, 0), (0, 0), (shift, 0)))
    sr = jnp.pad(right[..., :W - shift], ((0, 0), (0, 0), (0, 0), (shift, 0)))
    return jnp.concatenate([sl, sr], axis=1).reshape(B, 2 * F, 1, H, W)


if __name__ == "__main__":
    key = jax.random.PRNGKey(0)
    k1, k2 = jax.random.split(key)

    B, F, H, W = 2, 4, 16, 16
    shift = 3

    left = jax.random.normal(k1, (B, F, H, W), dtype=jnp.float32)
    right = jax.random.normal(k2, (B, F, H, W), dtype=jnp.float32)

    out = matchshifted(left, right, shift)
    out = jax.block_until_ready(out)

    ref = matchshifted_ref(left, right, shift)
    assert out.shape == (B, 2 * F, 1, H, W), out.shape
    assert jnp.allclose(out, ref, atol=1e-6), "mismatch vs reference"

    print("KERNEL_OK")
</pallas_src>

<mosaic_0001>
module attributes {stable_mosaic.version = 11 : i64} {
  func.func @matchshifted_kernel(%arg0: i32, %arg1: i32, %arg2: memref<1x4x256xf32, #tpu.memory_space<vmem>>, %arg3: memref<1x4x256xf32, #tpu.memory_space<vmem>>, %arg4: memref<1x2x4x256xf32, #tpu.memory_space<vmem>>) attributes {dimension_semantics = [#tpu.dimension_semantics<parallel>, #tpu.dimension_semantics<parallel>], iteration_bounds = array<i64: 2, 1>, scalar_prefetch = 0 : i64, scratch_operands = 0 : i64, tpu.core_type = #tpu.core_type<tc>, window_params = [{transform_indices = @transform_0, window_bounds = array<i64: 1, 4, 256>}, {transform_indices = @transform_1, window_bounds = array<i64: 1, 4, 256>}, {transform_indices = @transform_2, window_bounds = array<i64: 1, 2, 4, 256>}]} {
    %c0 = arith.constant 0 : index
    %c0_0 = arith.constant 0 : index
    %c0_1 = arith.constant 0 : index
    %0 = vector.load %arg2[%c0, %c0_0, %c0_1] : memref<1x4x256xf32, #tpu.memory_space<vmem>>, vector<1x4x256xf32>
    %1 = vector.shape_cast %0 : vector<1x4x256xf32> to vector<4x256xf32>
    %c0_2 = arith.constant 0 : index
    %c0_3 = arith.constant 0 : index
    %c0_4 = arith.constant 0 : index
    %2 = vector.load %arg3[%c0_2, %c0_3, %c0_4] : memref<1x4x256xf32, #tpu.memory_space<vmem>>, vector<1x4x256xf32>
    %3 = vector.shape_cast %2 : vector<1x4x256xf32> to vector<4x256xf32>
    %4 = tpu.iota {dimensions = array<i32: 1>} : vector<1x256xi32>
    %c15_i32 = arith.constant 15 : i32
    %5 = vector.broadcast %c15_i32 : i32 to vector<1x256xi32>
    %6 = arith.andi %4, %5 : vector<1x256xi32>
    %c3_i32 = arith.constant 3 : i32
    %7 = vector.broadcast %c3_i32 : i32 to vector<1x256xi32>
    %8 = arith.cmpi sge, %6, %7 : vector<1x256xi32>
    %cst = arith.constant 0.000000e+00 : f32
    %9 = vector.shape_cast %8 : vector<1x256xi1> to vector<1x256xi1>
    %10 = vector.broadcast %9 : vector<1x256xi1> to vector<4x256xi1>
    %11 = vector.broadcast %cst : f32 to vector<4x256xf32>
    %12 = arith.select %10, %1, %11 : vector<4x256xi1>, vector<4x256xf32>
    %c0_5 = arith.constant 0 : index
    %c0_6 = arith.constant 0 : index
    %c0_7 = arith.constant 0 : index
    %c0_8 = arith.constant 0 : index
    %13 = vector.load %arg4[%c0_5, %c0_6, %c0_7, %c0_8] : memref<1x2x4x256xf32, #tpu.memory_space<vmem>>, vector<1x1x4x256xf32>
    %14 = vector.shape_cast %13 : vector<1x1x4x256xf32> to vector<4x256xf32>
    %15 = vector.shape_cast %12 : vector<4x256xf32> to vector<1x1x4x256xf32>
    tpu.vector_store %arg4[%c0_5, %c0_6, %c0_7, %c0_8], %15 {strides = array<i32>} : memref<1x2x4x256xf32, #tpu.memory_space<vmem>>, vector<1x1x4x256xf32>,
    %c3_i32_9 = arith.constant 3 : i32
    %16 = tpu.dynamic_rotate %3 by %c3_i32_9 dim 1 : vector<4x256xf32>, i32 -> vector<4x256xf32>
    %cst_10 = arith.constant 0.000000e+00 : f32
    %17 = vector.shape_cast %8 : vector<1x256xi1> to vector<1x256xi1>
    %18 = vector.broadcast %17 : vector<1x256xi1> to vector<4x256xi1>
    %19 = vector.broadcast %cst_10 : f32 to vector<4x256xf32>
    %20 = arith.select %18, %16, %19 : vector<4x256xi1>, vector<4x256xf32>
    %c0_11 = arith.constant 0 : index
    %c1 = arith.constant 1 : index
    %c0_12 = arith.constant 0 : index
    %c0_13 = arith.constant 0 : index
    %21 = vector.load %arg4[%c0_11, %c1, %c0_12, %c0_13] : memref<1x2x4x256xf32, #tpu.memory_space<vmem>>, vector<1x1x4x256xf32>
    %22 = vector.shape_cast %21 : vector<1x1x4x256xf32> to vector<4x256xf32>
    %23 = vector.shape_cast %20 : vector<4x256xf32> to vector<1x1x4x256xf32>
    tpu.vector_store %arg4[%c0_11, %c1, %c0_12, %c0_13], %23 {strides = array<i32>} : memref<1x2x4x256xf32, #tpu.memory_space<vmem>>, vector<1x1x4x256xf32>,
    return
  }
  func.func @transform_0(%arg0: i32, %arg1: i32) -> (i32, i32, i32) {
    %c0_i32 = arith.constant 0 : i32
    %c0_i32_0 = arith.constant 0 : i32
    return %arg0, %arg1, %c0_i32 : i32, i32, i32
  }
  func.func @transform_1(%arg0: i32, %arg1: i32) -> (i32, i32, i32) {
    %c0_i32 = arith.constant 0 : i32
    %c0_i32_0 = arith.constant 0 : i32
    return %arg0, %arg1, %c0_i32 : i32, i32, i32
  }
  func.func @transform_2(%arg0: i32, %arg1: i32) -> (i32, i32, i32, i32) {
    %c0_i32 = arith.constant 0 : i32
    %c0_i32_0 = arith.constant 0 : i32
    %c0_i32_1 = arith.constant 0 : i32
    return %arg0, %c0_i32, %arg1, %c0_i32_0 : i32, i32, i32, i32
  }
}

</mosaic_0001>

<llo_original>
// kernel: tpu_custom_call.1
$region0: #{tpu_custom_call.1}
  #allocation0 [shape = 'u32[]', space=smem, size = 0x4, offset = 0x4, fixed_abs, tag = 'smem constant byte address 0x4 - core index']
  #allocation1 [shape = 'u32[144,128]{1,0:T(1,128)}', space=vmem, size = 0x12000, scoped, tag = 'internal scratch']
  %s0 = inlined_call_operand.hbm [shape: f32[2,4,256], index: 0, kind: input, shape index: {}]
  %s1 = inlined_call_operand.hbm [shape: f32[2,4,256], index: 1, kind: input, shape index: {}]
  %s2 = inlined_call_operand.hbm [shape: f32[2,2,4,256], index: 2, kind: output, shape index: {}]
  %s3 = sld [smem:[#allocation0]]
  $region49: #{tpu_custom_call.1} parent=0
    _
  %s5 = ssub.s32 1, %s3
  %s6 = scalar_select 0, %s5, %s3
  $region1: #{tpu_custom_call.1} parent=0
    #allocation2 [shape = 'u8[8192]{0}', space=vmem, size = 0x2000, scoped, tag = 'input window, operand 0']
    #allocation3 [shape = 's32[2]{0}', space=sflag, size = 0x8, scoped, tag = 'scoped memory for tpu_custom_call.1']
    #allocation4 [shape = 's32[2]{0}', space=sflag, size = 0x8, scoped, tag = 'scoped memory for tpu_custom_call.1']
    #allocation5 [shape = 'u8[8192]{0}', space=vmem, size = 0x2000, scoped, tag = 'input window, operand 1']
    #allocation6 [shape = 's32[2]{0}', space=sflag, size = 0x8, scoped, tag = 'scoped memory for tpu_custom_call.1']
    #allocation7 [shape = 'u8[16384]{0}', space=vmem, size = 0x4000, scoped, tag = 'output window, operand 0']
    %7 = vsyncpa [#allocation3], 0
    %s8 = scalar_lea.sflag [#allocation3], 1
    %9 = vsyncpa %s8, 0
    %10 = vsyncpa [#allocation6], 0
    %s11 = scalar_lea.sflag [#allocation6], 1
    %12 = vsyncpa %s11, 0
    %13 = vsyncpa [#allocation4], 0
    %s14 = scalar_lea.sflag [#allocation4], 1
    %15 = vsyncpa %s14, 0
    loop: start=0, step=1, limit=4
    $region2: #{tpu_custom_call.1} parent=1 // loop_pre_header
      _
    $region3: #{tpu_custom_call.1} parent=1 // loop_header
      %s17 = sphi 0, %s21
      %p18 = scmp.ge.s32.totalorder %s17, 4
      %s24 = sphi 0, %s36
      %s25 = sphi 0, %s32
      %s26 = sphi 0, %s24
      %s27 = sphi 0, %s25
      %s28 = sphi 0, %s26
      %s29 = sphi 0, %s27
      %s41 = sphi 0, %s43
      %s44 = sphi 0, %s41
      %s45 = sphi 0, %s44
      %s61 = sphi 0, %s45
      %s69 = sphi 0, %s71
      %s72 = sphi 0, %s69
      %s73 = sphi 0, %s72
      %s89 = sphi 0, %s73
      %s97 = sphi 0, %s99
      %s100 = sphi 0, %s97
      %s101 = sphi 0, %s100
      %s117 = sphi 0, %s101
    $region4: #{tpu_custom_call.1} parent=1 // loop_header_branch
      %20 = sbr.rel (%p18) target = $region8
    $region5: #{tpu_custom_call.1} parent=1 // loop_body
      %s22 = ssub.s32 %s17, 1
      %s23 = ssub.s32 %s17, 2
      %s30 = sadd.s32 1, %s25
      %p31 = scmp.ge.s32.totalorder %s30, 1
      %s32 = scalar_select %p31, 0, %s30
      %s33 = sadd.s32 1, %s24
      %s34 = scalar_select %p31, %s33, %s24
      %p35 = scmp.ge.s32.totalorder %s34, 2
      %s36 = scalar_select %p35, 0, %s34
      %s37 = ssub.s32 %s24, %s36
      %s38 = ssub.s32 %s25, %s32
      %s39 = sor.u32 %s37, %s38
      %p40 = scmp.eq.s32.totalorder %s39, 0
      %s42 = sadd.s32 %s41, 1
      %s43 = scalar_select %p40, %s41, %s42
      %p46 = pneg %p40
      %p47 = scmp.eq.s32.totalorder %s17, 1
      %p48 = por %p46, %p47
      %p49 = scmp.ne.s32.totalorder %s41, %s44
      %p50 = scmp.eq.s32.totalorder %s17, 0
      %p51 = por %p49, %p50
      %p52 = scmp.ne.s32.totalorder %s41, %s44
      %p53 = scmp.eq.s32.totalorder %s22, 1
      %p54 = por %p52, %p53
      %p55 = scmp.ne.s32.totalorder %s44, %s45
      %p56 = scmp.eq.s32.totalorder %s22, 0
      %p57 = por %p55, %p56
      %p58 = scmp.ne.s32.totalorder %s44, %s45
      %p59 = scmp.eq.s32.totalorder %s23, 1
      %p60 = por %p58, %p59
      %p62 = scmp.ne.s32.totalorder %s45, %s61
      %p63 = scmp.eq.s32.totalorder %s23, 0
      %p64 = por %p62, %p63
      %s65 = ssub.s32 %s24, %s36
      %s66 = ssub.s32 %s25, %s32
      %s67 = sor.u32 %s65, %s66
      %p68 = scmp.eq.s32.totalorder %s67, 0
      %s70 = sadd.s32 %s69, 1
      %s71 = scalar_select %p68, %s69, %s70
      %p74 = pneg %p68
      %p75 = scmp.eq.s32.totalorder %s17, 1
      %p76 = por %p74, %p75
      %p77 = scmp.ne.s32.totalorder %s69, %s72
      %p78 = scmp.eq.s32.totalorder %s17, 0
      %p79 = por %p77, %p78
      %p80 = scmp.ne.s32.totalorder %s69, %s72
      %p81 = scmp.eq.s32.totalorder %s22, 1
      %p82 = por %p80, %p81
      %p83 = scmp.ne.s32.totalorder %s72, %s73
      %p84 = scmp.eq.s32.totalorder %s22, 0
      %p85 = por %p83, %p84
      %p86 = scmp.ne.s32.totalorder %s72, %s73
      %p87 = scmp.eq.s32.totalorder %s23, 1
      %p88 = por %p86, %p87
      %p90 = scmp.ne.s32.totalorder %s73, %s89
      %p91 = scmp.eq.s32.totalorder %s23, 0
      %p92 = por %p90, %p91
      %s93 = ssub.s32 %s24, %s36
      %s94 = ssub.s32 %s25, %s32
      %s95 = sor.u32 %s93, %s94
      %p96 = scmp.eq.s32.totalorder %s95, 0
      %s98 = sadd.s32 %s97, 1
      %s99 = scalar_select %p96, %s97, %s98
      %p102 = pneg %p96
      %p103 = scmp.eq.s32.totalorder %s17, 1
      %p104 = por %p102, %p103
      %p105 = scmp.ne.s32.totalorder %s97, %s100
      %p106 = scmp.eq.s32.totalorder %s17, 0
      %p107 = por %p105, %p106
      %p108 = scmp.ne.s32.totalorder %s97, %s100
      %p109 = scmp.eq.s32.totalorder %s22, 1
      %p110 = por %p108, %p109
      %p111 = scmp.ne.s32.totalorder %s100, %s101
      %p112 = scmp.eq.s32.totalorder %s22, 0
      %p113 = por %p111, %p112
      %p114 = scmp.ne.s32.totalorder %s100, %s101
      %p115 = scmp.eq.s32.totalorder %s23, 1
      %p116 = por %p114, %p115
      %p118 = scmp.ne.s32.totalorder %s101, %s117
      %p119 = scmp.eq.s32.totalorder %s23, 0
      %p120 = por %p118, %p119
      %p121 = scmp.le.s32.totalorder 1, %s17
      %p122 = scmp.lt.s32.totalorder %s17, 3
      %p123 = pnand %p121, %p122
      %p124 = pneg %p123
      // Predicated region
      $region9: #{tpu_custom_call.1} parent=5 // pred_check
        _
      $region10: #{tpu_custom_call.1} parent=5 // pred_check_branch
        %126 = sbr.rel (%p123) target = $region12
      $region11: #{tpu_custom_call.1} parent=5 // pred_region
        %s127 = ssub.s32 %s17, 1
      $region12: #{tpu_custom_call.1} parent=5 // pred_fallthru
        _
      %p128 = scmp.lt.s32.totalorder %s17, 2
      // Predicated region
      $region13: #{tpu_custom_call.1} parent=5 // pred_check
        %p129 = pneg %p128
      $region14: #{tpu_custom_call.1} parent=5 // pred_check_branch
        %131 = sbr.rel (%p129) target = $region16
      $region15: #{tpu_custom_call.1} parent=5 // pred_region
        // Predicated region
        $region17: #{tpu_custom_call.1} parent=15 // pred_check
          %p132 = pneg %p51
        $region18: #{tpu_custom_call.1} parent=15 // pred_check_branch
          %134 = sbr.rel (%p132) target = $region20
        $region19: #{tpu_custom_call.1} parent=15 // pred_region
          %s135 = sand.u32 %s41, 1
          %s136 = scalar_lea.sflag [#allocation3], %s135
          %s137 = sand.u32 %s41, 1
          %s138 = smul.addr %s137, 8
          %s139 = scalar_lea.vmem [#allocation2], %s138
          %s141 = ssub.s32 128, 128
          %142 = vsyncadd %s136, %s141
          %s143 = smul.addr %s25, 2
          %s144 = smul.addr %s24, 2
          %s145 = sadd.s32 %s143, %s144
          %s146 = smul.addr %s145, 64
          %s147 = scalar_lea.hbm %s0, %s146
          %s149 = sshll.u32 %s139, 4
          %s150 = int_to_ptr.vmem [resolvable:$true] %s149
          %152 = dma.hbm_to_vmem [thread:$0]  %s147, 128, %s150, %s136
        $region20: #{tpu_custom_call.1} parent=15 // pred_fallthru
          _
        // Predicated region
        $region21: #{tpu_custom_call.1} parent=15 // pred_check
          %p153 = pneg %p79
        $region22: #{tpu_custom_call.1} parent=15 // pred_check_branch
          %155 = sbr.rel (%p153) target = $region24
        $region23: #{tpu_custom_call.1} parent=15 // pred_region
          %s156 = sand.u32 %s69, 1
          %s157 = scalar_lea.sflag [#allocation6], %s156
          %s158 = sand.u32 %s69, 1
          %s159 = smul.addr %s158, 8
          %s160 = scalar_lea.vmem [#allocation5], %s159
          %s162 = ssub.s32 128, 128
          %163 = vsyncadd %s157, %s162
          %s164 = smul.addr %s25, 2
          %s165 = smul.addr %s24, 2
          %s166 = sadd.s32 %s164, %s165
          %s167 = smul.addr %s166, 64
          %s168 = scalar_lea.hbm %s1, %s167
          %s170 = sshll.u32 %s160, 4
          %s171 = int_to_ptr.vmem [resolvable:$true] %s170
          %173 = dma.hbm_to_vmem [thread:$0]  %s168, 128, %s171, %s157
        $region24: #{tpu_custom_call.1} parent=15 // pred_fallthru
          _
      $region16: #{tpu_custom_call.1} parent=5 // pred_fallthru
        _
      %p174 = scmp.le.s32.totalorder 1, %s17
      %p175 = scmp.lt.s32.totalorder %s17, 3
      %p176 = pnand %p174, %p175
      %p177 = pneg %p176
      // Predicated region
      $region25: #{tpu_custom_call.1} parent=5 // pred_check
        _
      $region26: #{tpu_custom_call.1} parent=5 // pred_check_branch
        %179 = sbr.rel (%p176) target = $region28
      $region27: #{tpu_custom_call.1} parent=5 // pred_region
        %s180 = ssub.s32 %s17, 1
        %s181 = sand.u32 %s44, 1
        %s182 = scalar_lea.sflag [#allocation3], %s181
        %s183 = sand.u32 %s44, 1
        %s184 = smul.addr %s183, 8
        %s185 = scalar_lea.vmem [#allocation2], %s184
        // Predicated region
        $region29: #{tpu_custom_call.1} parent=27 // pred_check
          %p186 = pneg %p57
        $region30: #{tpu_custom_call.1} parent=27 // pred_check_branch
          %188 = sbr.rel (%p186) target = $region32
        $region31: #{tpu_custom_call.1} parent=27 // pred_region
          %189 = dma.done %s182, 128
        $region32: #{tpu_custom_call.1} parent=27 // pred_fallthru
          _
        %s190 = sand.u32 %s72, 1
        %s191 = scalar_lea.sflag [#allocation6], %s190
        %s192 = sand.u32 %s72, 1
        %s193 = smul.addr %s192, 8
        %s194 = scalar_lea.vmem [#allocation5], %s193
        // Predicated region
        $region33: #{tpu_custom_call.1} parent=27 // pred_check
          %p195 = pneg %p85
        $region34: #{tpu_custom_call.1} parent=27 // pred_check_branch
          %197 = sbr.rel (%p195) target = $region36
        $region35: #{tpu_custom_call.1} parent=27 // pred_region
          %198 = dma.done %s191, 128
        $region36: #{tpu_custom_call.1} parent=27 // pred_fallthru
          _
        %s199 = sand.u32 %s44, 1
        %s200 = scalar_lea.sflag [#allocation3], %s199
        %s201 = sand.u32 %s44, 1
        %s202 = smul.addr %s201, 8
        %s203 = scalar_lea.vmem [#allocation2], %s202
        %p204 = pneg %p57
        %p205 = pneg %p54
        %s206 = sand.u32 %s72, 1
        %s207 = scalar_lea.sflag [#allocation6], %s206
        %s208 = sand.u32 %s72, 1
        %s209 = smul.addr %s208, 8
        %s210 = scalar_lea.vmem [#allocation5], %s209
        %p211 = pneg %p85
        %p212 = pneg %p82
        %p213 = pneg %p113
        %p214 = pneg %p110
        %s215 = sand.u32 %s100, 1
        %s216 = scalar_lea.sflag [#allocation4], %s215
        %s217 = sand.u32 %s100, 1
        %s218 = smul.addr %s217, 16
        %s219 = scalar_lea.vmem [#allocation7], %s218
        %v220 = vld [vmem:[%s185] sm:$0xff]
        %v221 = vld [vmem:[%s194] sm:$0xff]
        %v222 = vlaneseq
        %v223 = vand.u32 %v222, 127
        %v224 = vadd.s32 %v223, 128
        %v225 = vand.u32 %v223, 15
        %v226 = vand.u32 %v224, 15
        %vm227 = vcmp.ge.s32.totalorder %v225, 3
        %vm228 = vcmp.ge.s32.totalorder %v226, 3
        %v229 = vsel %vm227, 1, 0
        %v230 = vsel %vm228, 1, 0
        %vm231 = vcmp.eq.s32.totalorder %v229, 1
        %vm232 = vcmp.eq.s32.totalorder %v230, 1
        %v234 = vcombine.high %v220, %v220
        %v236 = vsel %vm231, %v220, 0.0
        %v237 = vsel %vm232, %v234, 0.0
        %v240 = vcombine.low %v236, %v237
        %242 = vst [vmem:[%s219] sm:$0xff] %v240
        %v244 = vcombine.high %v221, %v221
        %246 = vrot.lane.b32.xlu0 %v221, 3
        %v247 = vpop.permute.xlu0 %246
        %248 = vrot.lane.b32.xlu0 %v244, 3
        %v249 = vpop.permute.xlu0 %248
        %vm250 = vcmp.lt.s32.totalorder %v223, 3
        %v251 = vsel %vm250, %v247, %v249
        %v252 = vsel %vm250, %v249, %v247
        %v253 = vsel %vm231, %v252, 0.0
        %v254 = vsel %vm232, %v251, 0.0
        %v257 = vcombine.low %v253, %v254
        %s259 = scalar_lea.vmem %s219, 8 [#allocation7]
        %260 = vst [vmem:[%s259] sm:$0xff] %v257
        %s261 = sand.u32 %s100, 1
        %s262 = scalar_lea.sflag [#allocation4], %s261
        %s263 = sand.u32 %s100, 1
        %s264 = smul.addr %s263, 16
        %s265 = scalar_lea.vmem [#allocation7], %s264
        // Predicated region
        $region37: #{tpu_custom_call.1} parent=27 // pred_check
          %p266 = pneg %p110
        $region38: #{tpu_custom_call.1} parent=27 // pred_check_branch
          %268 = sbr.rel (%p266) target = $region40
        $region39: #{tpu_custom_call.1} parent=27 // pred_region
          %s270 = ssub.s32 256, 256
          %271 = vsyncadd %s262, %s270
          %s272 = smul.addr %s27, 2
          %s273 = smul.addr %s26, 4
          %s274 = sadd.s32 %s272, %s273
          %s275 = smul.addr %s274, 64
          %s276 = scalar_lea.hbm %s2, %s275
          %s277 = sshll.u32 %s265, 4
          %s278 = int_to_ptr.vmem [resolvable:$true] %s277
          %283 = dma.vmem_to_hbm [thread:$0]  %s278, 256, %s276, %s262, 128, 128, 8
        $region40: #{tpu_custom_call.1} parent=27 // pred_fallthru
          _
      $region28: #{tpu_custom_call.1} parent=5 // pred_fallthru
        _
      %p284 = scmp.le.s32.totalorder 2, %s17
      // Predicated region
      $region41: #{tpu_custom_call.1} parent=5 // pred_check
        %p285 = pneg %p284
      $region42: #{tpu_custom_call.1} parent=5 // pred_check_branch
        %287 = sbr.rel (%p285) target = $region44
      $region43: #{tpu_custom_call.1} parent=5 // pred_region
        %s288 = ssub.s32 %s17, 2
        // Predicated region
        $region45: #{tpu_custom_call.1} parent=43 // pred_check
          %p289 = pneg %p116
        $region46: #{tpu_custom_call.1} parent=43 // pred_check_branch
          %291 = sbr.rel (%p289) target = $region48
        $region47: #{tpu_custom_call.1} parent=43 // pred_region
          %s292 = sand.u32 %s101, 1
          %s293 = scalar_lea.sflag [#allocation4], %s292
          %s294 = sand.u32 %s101, 1
          %s295 = smul.addr %s294, 16
          %s296 = scalar_lea.vmem [#allocation7], %s295
          %297 = dma.done %s293, 256
        $region48: #{tpu_custom_call.1} parent=43 // pred_fallthru
          _
      $region44: #{tpu_custom_call.1} parent=5 // pred_fallthru
        _
    $region6: #{tpu_custom_call.1} parent=1 // loop_footer
      %s21 = sadd.s32 1, %s17
    $region7: #{tpu_custom_call.1} parent=1 // loop_footer_branch
      %16 = sbr.rel target = $region3
    $region8: #{tpu_custom_call.1} parent=1 // loop_exit
      _
    %298 = vsyncpa [#allocation3], 1
    %s299 = scalar_lea.sflag [#allocation3], 1
    %300 = vsyncpa %s299, 1
    %301 = vsyncpa [#allocation6], 1
    %s302 = scalar_lea.sflag [#allocation6], 1
    %303 = vsyncpa %s302, 1
    %304 = vsyncpa [#allocation4], 1
    %s305 = scalar_lea.sflag [#allocation4], 1
    %306 = vsyncpa %s305, 1

</llo_original>
